<compile_context>
chip_gen: v7x
topology: tpu7x:2x2x1
jax: 0.10.0
libtpu: 0.0.40
codegen_flags: <defaults>
</compile_context>

<pallas_src>
import math

import jax
import jax.numpy as jnp
from jax.experimental import pallas as pl
from jax.experimental.pallas import tpu as pltpu


def _normalize_kernel(x_ref, mean_ref, inv_std_ref, o_ref):
    # x_ref:       (row_tile, W)  current tile of the (folded) input
    # mean_ref:    (1, W)         broadcast over rows, resident across grid
    # inv_std_ref: (1, W)         precomputed 1/std, resident across grid
    # Hot path is sub + mul on the VPU; the kernel is pure HBM-bandwidth bound.
    o_ref[...] = (x_ref[...] - mean_ref[...]) * inv_std_ref[...]


def normalize(x, mean, std, *, target_block_bytes=2 * 1024 * 1024):
    """(x - mean) / std with mean/std broadcast over the last axis of x."""
    orig_shape = x.shape
    feat = orig_shape[-1]
    assert mean.shape == (feat,) and std.shape == (feat,)

    # --- wrapper-side glue (tiny F-length vectors only, no input-sized work) --
    # Exact f32 reciprocal so the kernel does sub+mul instead of a per-element
    # divide (matches (x - mean)/std to ~2 ulp).
    inv_std = (1.0 / std.astype(jnp.float32)).astype(x.dtype)
    mean_c = mean.astype(x.dtype)

    x2d = x.reshape(-1, feat)
    rows = x2d.shape[0]

    # Fold k consecutive rows into the lane axis so the last dim is a multiple
    # of 128 (lane-dense output => unmasked vst, full vreg utilization).
    lane = 128
    k = lane // math.gcd(feat, lane)
    if k > 1 and rows % k != 0:
        k = 1  # fallback: still correct, just not lane-dense
    width = k * feat
    rows_f = rows // k
    x_fold = x2d.reshape(rows_f, width)
    mean_row = jnp.tile(mean_c.reshape(1, feat), (1, k))
    inv_std_row = jnp.tile(inv_std.reshape(1, feat), (1, k))

    # Large row tile (~target_block_bytes per block) to amortize per-grid-step
    # overhead; rounded to the sublane packing for the dtype (8 f32 / 16 bf16 /
    # 32 int8-fp8). Double-buffered in+out stays well under VMEM limits on all
    # generations (~4x block bytes total).
    itemsize = jnp.dtype(x.dtype).itemsize
    sub_mult = max(8, 32 // itemsize)
    row_tile = max(1, target_block_bytes // (width * itemsize))
    row_tile = max(sub_mult, (row_tile // sub_mult) * sub_mult)
    if row_tile >= rows_f:
        row_tile = rows_f  # single full-extent block (allowed by tiling rules)
    grid = (pl.cdiv(rows_f, row_tile),)  # Pallas masks the partial last block

    out_fold = pl.pallas_call(
        _normalize_kernel,
        out_shape=jax.ShapeDtypeStruct((rows_f, width), x.dtype),
        grid_spec=pltpu.PrefetchScalarGridSpec(
            num_scalar_prefetch=0,
            grid=grid,
            in_specs=[
                pl.BlockSpec((row_tile, width), lambda i: (i, 0)),  # x tile
                pl.BlockSpec((1, width), lambda i: (0, 0)),         # mean (resident)
                pl.BlockSpec((1, width), lambda i: (0, 0)),         # 1/std (resident)
            ],
            out_specs=pl.BlockSpec((row_tile, width), lambda i: (i, 0)),
        ),
        compiler_params=pltpu.CompilerParams(
            dimension_semantics=("parallel",),
            vmem_limit_bytes=32 * 1024 * 1024,
        ),
    )(x_fold, mean_row, inv_std_row)

    return out_fold.reshape(orig_shape)


if __name__ == "__main__":
    key = jax.random.PRNGKey(0)
    k_x, k_m, k_s = jax.random.split(key, 3)

    # Small shapes consistent with the module: [batch, seq, num_all_features]
    batch, seq, feat = 2, 8, 32
    x = jax.random.normal(k_x, (batch, seq, feat), dtype=jnp.float32)

    # Deterministic synthetic "statistics" (mean, std) of length num_all_features.
    mean = jax.random.normal(k_m, (feat,), dtype=jnp.float32)
    std = jax.random.uniform(k_s, (feat,), dtype=jnp.float32, minval=0.5, maxval=2.0)

    out = normalize(x, mean, std)
    out = jax.block_until_ready(out)

    # Reference check against plain JAX broadcasting semantics (== PyTorch).
    ref = (x - mean) / std
    assert out.shape == x.shape and out.dtype == x.dtype
    assert jnp.allclose(out, ref, rtol=1e-5, atol=1e-6)

    print("KERNEL_OK")
</pallas_src>

<mosaic_0001>
module attributes {stable_mosaic.version = 11 : i64} {
  func.func @_normalize_kernel(%arg0: i32, %arg1: memref<4x128xf32, #tpu.memory_space<vmem>>, %arg2: memref<1x128xf32, #tpu.memory_space<vmem>>, %arg3: memref<1x128xf32, #tpu.memory_space<vmem>>, %arg4: memref<4x128xf32, #tpu.memory_space<vmem>>) attributes {dimension_semantics = [#tpu.dimension_semantics<parallel>], iteration_bounds = array<i64: 1>, scalar_prefetch = 0 : i64, scratch_operands = 0 : i64, tpu.core_type = #tpu.core_type<tc>, window_params = [{transform_indices = @transform_0, window_bounds = array<i64: 4, 128>}, {pipeline_mode = #tpu.pipeline_mode<synchronous>, transform_indices = @transform_1, window_bounds = array<i64: 1, 128>}, {pipeline_mode = #tpu.pipeline_mode<synchronous>, transform_indices = @transform_2, window_bounds = array<i64: 1, 128>}, {transform_indices = @transform_3, window_bounds = array<i64: 4, 128>}]} {
    %c0 = arith.constant 0 : index
    %c0_0 = arith.constant 0 : index
    %0 = vector.load %arg1[%c0, %c0_0] : memref<4x128xf32, #tpu.memory_space<vmem>>, vector<4x128xf32>
    %c0_1 = arith.constant 0 : index
    %c0_2 = arith.constant 0 : index
    %1 = vector.load %arg2[%c0_1, %c0_2] : memref<1x128xf32, #tpu.memory_space<vmem>>, vector<1x128xf32>
    %2 = vector.broadcast %1 : vector<1x128xf32> to vector<4x128xf32>
    %3 = arith.subf %0, %2 : vector<4x128xf32>
    %c0_3 = arith.constant 0 : index
    %c0_4 = arith.constant 0 : index
    %4 = vector.load %arg3[%c0_3, %c0_4] : memref<1x128xf32, #tpu.memory_space<vmem>>, vector<1x128xf32>
    %5 = vector.broadcast %4 : vector<1x128xf32> to vector<4x128xf32>
    %6 = arith.mulf %3, %5 : vector<4x128xf32>
    %c0_5 = arith.constant 0 : index
    %c0_6 = arith.constant 0 : index
    %7 = vector.load %arg4[%c0_5, %c0_6] : memref<4x128xf32, #tpu.memory_space<vmem>>, vector<4x128xf32>
    tpu.vector_store %arg4[%c0_5, %c0_6], %6 {strides = array<i32>} : memref<4x128xf32, #tpu.memory_space<vmem>>, vector<4x128xf32>,
    return
  }
  func.func @transform_0(%arg0: i32) -> (i32, i32) {
    %c0_i32 = arith.constant 0 : i32
    %c0_i32_0 = arith.constant 0 : i32
    return %arg0, %c0_i32 : i32, i32
  }
  func.func @transform_1(%arg0: i32) -> (i32, i32) {
    %c0_i32 = arith.constant 0 : i32
    %c0_i32_0 = arith.constant 0 : i32
    %c0_i32_1 = arith.constant 0 : i32
    return %c0_i32, %c0_i32_0 : i32, i32
  }
  func.func @transform_2(%arg0: i32) -> (i32, i32) {
    %c0_i32 = arith.constant 0 : i32
    %c0_i32_0 = arith.constant 0 : i32
    %c0_i32_1 = arith.constant 0 : i32
    return %c0_i32, %c0_i32_0 : i32, i32
  }
  func.func @transform_3(%arg0: i32) -> (i32, i32) {
    %c0_i32 = arith.constant 0 : i32
    %c0_i32_0 = arith.constant 0 : i32
    return %arg0, %c0_i32 : i32, i32
  }
}

</mosaic_0001>

<llo_original>
// kernel: tpu_custom_call.1
$region0: #{tpu_custom_call.1}
  #allocation0 [shape = 'u32[]', space=smem, size = 0x4, offset = 0x4, fixed_abs, tag = 'smem constant byte address 0x4 - core index']
  #allocation1 [shape = 'u32[144,128]{1,0:T(1,128)}', space=vmem, size = 0x12000, scoped, tag = 'internal scratch']
  %s0 = inlined_call_operand.hbm [shape: f32[4,128], index: 0, kind: input, shape index: {}]
  %s1 = inlined_call_operand.vmem [shape: f32[1,128], index: 1, kind: input, shape index: {}]
  %s2 = inlined_call_operand.vmem [shape: f32[1,128], index: 2, kind: input, shape index: {}]
  %s3 = inlined_call_operand.hbm [shape: f32[4,128], index: 3, kind: output, shape index: {}]
  %s4 = sld [smem:[#allocation0]]
  $region26: #{tpu_custom_call.1} parent=0
    _
  %s6 = ssub.s32 1, %s4
  %s7 = scalar_select 0, %s6, %s4
  $region1: #{tpu_custom_call.1} parent=0
    #allocation2 [shape = 'u8[2048]{0}', space=vmem, size = 0x800, scoped, tag = 'input window, operand 0, single buffered']
    #allocation3 [shape = 's32[1]{0}', space=sflag, size = 0x4, scoped, tag = 'scoped memory for tpu_custom_call.1']
    #allocation4 [shape = 's32[1]{0}', space=sflag, size = 0x4, scoped, tag = 'scoped memory for tpu_custom_call.1']
    #allocation5 [shape = 'u8[2048]{0}', space=vmem, size = 0x800, scoped, tag = 'output window, operand 0, single buffered']
    %8 = vsyncpa [#allocation3], 0
    %9 = vsyncpa [#allocation4], 0
    // Predicated region
    $region2: #{tpu_custom_call.1} parent=1 // pred_check
      _
    $region3: #{tpu_custom_call.1} parent=1 // pred_check_branch
      %11 = sbr.rel (0) target = $region5
    $region4: #{tpu_custom_call.1} parent=1 // pred_region
      %s13 = ssub.s32 64, 64
      %14 = vsyncadd [#allocation3], %s13
      %s16 = sshll.u32 [#allocation2], 4
      %s17 = int_to_ptr.vmem [resolvable:$true] %s16
      %19 = dma.hbm_to_vmem [thread:$0]  %s0, 64, %s17, [#allocation3]
    $region5: #{tpu_custom_call.1} parent=1 // pred_fallthru
      _
    // Predicated region
    $region6: #{tpu_custom_call.1} parent=1 // pred_check
      _
    $region7: #{tpu_custom_call.1} parent=1 // pred_check_branch
      %21 = sbr.rel (0) target = $region9
    $region8: #{tpu_custom_call.1} parent=1 // pred_region
      _
    $region9: #{tpu_custom_call.1} parent=1 // pred_fallthru
      _
    // Predicated region
    $region10: #{tpu_custom_call.1} parent=1 // pred_check
      _
    $region11: #{tpu_custom_call.1} parent=1 // pred_check_branch
      %23 = sbr.rel (0) target = $region13
    $region12: #{tpu_custom_call.1} parent=1 // pred_region
      _
    $region13: #{tpu_custom_call.1} parent=1 // pred_fallthru
      _
    // Predicated region
    $region14: #{tpu_custom_call.1} parent=1 // pred_check
      _
    $region15: #{tpu_custom_call.1} parent=1 // pred_check_branch
      %25 = sbr.rel (0) target = $region17
    $region16: #{tpu_custom_call.1} parent=1 // pred_region
      %26 = dma.done [#allocation3], 64
    $region17: #{tpu_custom_call.1} parent=1 // pred_fallthru
      _
    %v27 = vld [vmem:[#allocation2] sm:$0xf]
    %v28 = vld [vmem:[%s1] sm:$0x1]
    %v30 = vlaneseq
    %v31 = vshrl.u32 %v30, 7
    %v32 = vsub.s32 0, %v31
    %v33 = vrot.slane %v28, %v32
    %v35 = vsub.f32 %v27, %v33
    %v36 = vld [vmem:[%s2] sm:$0x1]
    %v38 = vlaneseq
    %v39 = vshrl.u32 %v38, 7
    %v40 = vsub.s32 0, %v39
    %v41 = vrot.slane %v36, %v40
    %v43 = vmul.f32 %v35, %v41
    %44 = vst [vmem:[#allocation5] sm:$0xf] %v43
    // Predicated region
    $region18: #{tpu_custom_call.1} parent=1 // pred_check
      _
    $region19: #{tpu_custom_call.1} parent=1 // pred_check_branch
      %46 = sbr.rel (0) target = $region21
    $region20: #{tpu_custom_call.1} parent=1 // pred_region
      %s48 = ssub.s32 64, 64
      %49 = vsyncadd [#allocation4], %s48
      %s51 = sshll.u32 [#allocation5], 4
      %s52 = int_to_ptr.vmem [resolvable:$true] %s51
      %54 = dma.vmem_to_hbm [thread:$0]  %s52, 64, %s3, [#allocation4]
    $region21: #{tpu_custom_call.1} parent=1 // pred_fallthru
      _
    // Predicated region
    $region22: #{tpu_custom_call.1} parent=1 // pred_check
      _
    $region23: #{tpu_custom_call.1} parent=1 // pred_check_branch
      %56 = sbr.rel (0) target = $region25
    $region24: #{tpu_custom_call.1} parent=1 // pred_region
      %57 = dma.done [#allocation4], 64
    $region25: #{tpu_custom_call.1} parent=1 // pred_fallthru
      _
    %58 = vsyncpa [#allocation3], 1
    %59 = vsyncpa [#allocation4], 1

</llo_original>
